<compile_context>
chip_gen: v7x
topology: tpu7x:2x2x1
jax: 0.10.0
libtpu: 0.0.40
codegen_flags: <defaults>
</compile_context>

<pallas_src>
import functools

import jax
import jax.numpy as jnp
from jax import lax
from jax.experimental import pallas as pl
from jax.experimental.pallas import tpu as pltpu


def _conv3x3_kernel(x_ref, w_ref, b_ref, o_ref, *, width):
    """Fused im2col + single GEMM + bias + ReLU for B_tile images.

    x_ref: [B_tile, Cin_pad, HW + 2*(W+1)]  flattened, zero-extended image (f32)
    w_ref: [Cout_pad, 9*Cin_pad]            weight matrix (bf16)
    b_ref: [Cout_pad, 1]                    bias (f32)
    o_ref: [B_tile, Cout_pad, HW]           output (f32), HW lane-dense (>=128)
    """
    b_tile = x_ref.shape[0]
    hw = o_ref.shape[2]
    ext = width + 1                       # zero-extension on each side of HW

    # Lane masks for taps whose flat-index shift would wrap across image rows
    # (built once per grid step; JAX does not CSE broadcasts).
    col = lax.broadcasted_iota(jnp.int32, (1, hw), 1) % width
    ok_left = col != 0                    # tap dw == 0 is invalid at j == 0
    ok_right = col != (width - 1)         # tap dw == 2 is invalid at j == W-1

    pieces = []
    for b in range(b_tile):               # static unroll over images in the block
        xb = x_ref[b]                     # [Cin_pad, HW + 2*ext] (f32)
        taps = []
        for t in range(9):                # static unroll over the 3x3 taps
            dh, dw = divmod(t, 3)
            off = ext + (dh - 1) * width + (dw - 1)   # static lane offset
            tap = xb[:, off:off + hw]                 # [Cin_pad, HW]
            if dw == 0:
                tap = jnp.where(ok_left, tap, 0.0)
            elif dw == 2:
                tap = jnp.where(ok_right, tap, 0.0)
            taps.append(tap)
        # K = 9*Cin_pad rows; every piece is a whole number of sublane tiles,
        # so this concat is tile-aligned (no relayout shuffles).
        pieces.append(jnp.concatenate(taps, axis=0))  # [K, HW]
    # Batched images extend the GEMM's N dimension; lane concat at multiples of
    # HW (a multiple of 128) is aligned.
    p_mat = pieces[0] if b_tile == 1 else jnp.concatenate(pieces, axis=1)
    p_mat = p_mat.astype(jnp.bfloat16)                # bf16 MXU operand

    # One MXU GEMM emits [Cout_pad, B_tile*HW] directly -- no epilogue transpose.
    res = jnp.dot(w_ref[...], p_mat, preferred_element_type=jnp.float32)
    res = jnp.maximum(res + b_ref[...], 0.0).astype(o_ref.dtype)
    for b in range(b_tile):
        o_ref[b] = res[:, b * hw:(b + 1) * hw]        # aligned lane slices


def _pick_batch_tile(n):
    """Images per grid step: the fattest step that still leaves >= 2 grid steps
    (v7x has 2 TensorCores; on v5e/v6e the grid is a serial loop, so fewer,
    fatter steps are a direct win)."""
    if n <= 1:
        return 1
    target = min(8, n // 2)
    for bt in range(target, 0, -1):
        if n % bt == 0:
            return bt
    return 1


def encoder_forward(image, weight, bias):
    """feature_map = relu(conv3x3_same(image) + bias), NCHW in / NCHW out.

    image:  [N, Cin, H, W]    (f32)
    weight: [Cout, Cin, 3, 3] (PyTorch conv layout)
    bias:   [Cout]
    """
    n, cin, h, w = image.shape
    cout = weight.shape[0]
    hw = h * w
    ext = w + 1
    cin_pad = ((cin + 7) // 8) * 8          # whole sublane tiles per tap
    k_dim = 9 * cin_pad
    cout_pad = ((cout + 127) // 128) * 128  # lane-width multiple
    b_tile = _pick_batch_tile(n)

    # Input prep: NO transpose.  NCHW -> [N, Cin, H*W] is a free row-major
    # reshape; the channel pad (Cin -> Cin_pad) and the +-(W+1) lane
    # zero-extension (which turns every conv tap into a static lane-offset
    # slice in the kernel) fuse into one tiny XLA pad.
    x = jnp.pad(image.reshape(n, cin, hw),
                ((0, 0), (0, cin_pad - cin), (ext, ext)))

    # [Cout, Cin, 3, 3] -> [Cout_pad, 9*Cin_pad] with k = (dh*3 + dw)*Cin_pad + c.
    w_mat = jnp.pad(weight.transpose(0, 2, 3, 1),
                    ((0, 0), (0, 0), (0, 0), (0, cin_pad - cin)))
    w_mat = w_mat.reshape(cout, k_dim)
    w_mat = jnp.pad(w_mat, ((0, cout_pad - cout), (0, 0))).astype(jnp.bfloat16)
    b_col = jnp.pad(bias, (0, cout_pad - cout)).reshape(cout_pad, 1)
    b_col = b_col.astype(jnp.float32)

    out = pl.pallas_call(
        functools.partial(_conv3x3_kernel, width=w),
        out_shape=jax.ShapeDtypeStruct((n, cout_pad, hw), jnp.float32),
        grid=(n // b_tile,),
        in_specs=[
            pl.BlockSpec((b_tile, cin_pad, hw + 2 * ext), lambda i: (i, 0, 0)),
            pl.BlockSpec((cout_pad, k_dim), lambda i: (0, 0)),
            pl.BlockSpec((cout_pad, 1), lambda i: (0, 0)),
        ],
        out_specs=pl.BlockSpec((b_tile, cout_pad, hw), lambda i: (i, 0, 0)),
        compiler_params=pltpu.CompilerParams(
            dimension_semantics=("parallel",)),
    )(x, w_mat, b_col)

    # [N, Cout_pad, H*W] -> [N, Cout, H, W]: pure reshape, no transpose; the
    # Cout slice is a no-op when Cout is already a multiple of 128.
    return out[:, :cout, :].reshape(n, cout, h, w).astype(image.dtype)


def _reference_forward(image, weight, bias):
    """Pure-JAX reference using the same bf16-rounded operands as the kernel."""
    x = image.astype(jnp.bfloat16).astype(jnp.float32)
    wt = weight.astype(jnp.bfloat16).astype(jnp.float32)
    n, cin, h, w = image.shape
    cout = weight.shape[0]
    xp = jnp.pad(x, ((0, 0), (0, 0), (1, 1), (1, 1)))
    out = jnp.zeros((n, cout, h, w), jnp.float32)
    for kh in range(3):
        for kw in range(3):
            out = out + jnp.einsum(
                'nchw,oc->nohw',
                xp[:, :, kh:kh + h, kw:kw + w],
                wt[:, :, kh, kw],
                precision=lax.Precision.HIGHEST)
    return jnp.maximum(out + bias[None, :, None, None], 0.0)


if __name__ == "__main__":
    key = jax.random.PRNGKey(0)
    k_img, k_w, k_b = jax.random.split(key, 3)

    # Small RGB batch; Cout = 128 (one lane width) stands in for the ResNeSt-50
    # trunk's feature channels (2048 = 16 * 128).  N = 4 exercises both the
    # batched grid step (B_tile = 2) and the 2-step "parallel" grid.
    N, CIN, H, W = 4, 3, 16, 16
    COUT = 128

    image = jax.random.normal(k_img, (N, CIN, H, W), dtype=jnp.float32)
    # Deterministic synthetic parameters (stand-in for 'resnest50.model').
    weight = (jax.random.normal(k_w, (COUT, CIN, 3, 3), dtype=jnp.float32)
              * (1.0 / jnp.sqrt(CIN * 9.0)))
    bias = jax.random.normal(k_b, (COUT,), dtype=jnp.float32) * 0.01

    feature_map = encoder_forward(image, weight, bias)
    jax.block_until_ready(feature_map)
    assert feature_map.shape == (N, COUT, H, W)

    ref = _reference_forward(image, weight, bias)
    max_err = float(jnp.max(jnp.abs(feature_map - ref)))
    assert max_err < 5e-3, f"max abs err {max_err}"

    print("KERNEL_OK")
</pallas_src>

<mosaic_0001>
module attributes {stable_mosaic.version = 11 : i64} {
  func.func @_conv3x3_kernel(%arg0: i32, %arg1: memref<2x8x290xf32, #tpu.memory_space<vmem>>, %arg2: memref<128x72xbf16, #tpu.memory_space<vmem>>, %arg3: memref<128x1xf32, #tpu.memory_space<vmem>>, %arg4: memref<2x128x256xf32, #tpu.memory_space<vmem>>) attributes {dimension_semantics = [#tpu.dimension_semantics<parallel>], iteration_bounds = array<i64: 2>, scalar_prefetch = 0 : i64, scratch_operands = 0 : i64, tpu.core_type = #tpu.core_type<tc>, window_params = [{transform_indices = @transform_0, window_bounds = array<i64: 2, 8, 290>}, {pipeline_mode = #tpu.pipeline_mode<synchronous>, transform_indices = @transform_1, window_bounds = array<i64: 128, 72>}, {pipeline_mode = #tpu.pipeline_mode<synchronous>, transform_indices = @transform_2, window_bounds = array<i64: 128, 1>}, {transform_indices = @transform_3, window_bounds = array<i64: 2, 128, 256>}]} {
    %0 = tpu.iota {dimensions = array<i32: 1>} : vector<1x256xi32>
    %c16_i32 = arith.constant 16 : i32
    %c0_i32 = arith.constant 0 : i32
    %1 = arith.cmpi eq, %c16_i32, %c0_i32 : i32
    %c1_i32 = arith.constant 1 : i32
    %2 = arith.select %1, %c1_i32, %c16_i32 : i32
    %3 = vector.broadcast %2 : i32 to vector<1x256xi32>
    %4 = arith.remsi %0, %3 : vector<1x256xi32>
    %c0_i32_0 = arith.constant 0 : i32
    %5 = vector.broadcast %c0_i32_0 : i32 to vector<1x256xi32>
    %6 = arith.cmpi ne, %4, %5 : vector<1x256xi32>
    %c0_i32_1 = arith.constant 0 : i32
    %7 = vector.broadcast %c0_i32_1 : i32 to vector<1x256xi32>
    %8 = arith.cmpi slt, %4, %7 : vector<1x256xi32>
    %c0_i32_2 = arith.constant 0 : i32
    %9 = arith.cmpi slt, %2, %c0_i32_2 : i32
    %10 = vector.broadcast %9 : i1 to vector<1x256xi1>
    %11 = vector.broadcast %10 : vector<1x256xi1> to vector<1x256xi1>
    %12 = arith.xori %8, %11 : vector<1x256xi1>
    %13 = arith.andi %12, %6 : vector<1x256xi1>
    %14 = vector.broadcast %2 : i32 to vector<1x256xi32>
    %15 = arith.addi %4, %14 : vector<1x256xi32>
    %16 = arith.select %13, %15, %4 : vector<1x256xi1>, vector<1x256xi32>
    %c0_i32_3 = arith.constant 0 : i32
    %17 = vector.broadcast %c0_i32_3 : i32 to vector<1x256xi32>
    %18 = arith.cmpi ne, %16, %17 : vector<1x256xi32>
    %c15_i32 = arith.constant 15 : i32
    %19 = vector.broadcast %c15_i32 : i32 to vector<1x256xi32>
    %20 = arith.cmpi ne, %16, %19 : vector<1x256xi32>
    %c0 = arith.constant 0 : index
    %c0_4 = arith.constant 0 : index
    %c0_5 = arith.constant 0 : index
    %21 = vector.load %arg1[%c0, %c0_4, %c0_5] : memref<2x8x290xf32, #tpu.memory_space<vmem>>, vector<1x8x290xf32>
    %22 = vector.shape_cast %21 : vector<1x8x290xf32> to vector<8x290xf32>
    %23 = vector.extract_strided_slice %22 {offsets = [0, 0], sizes = [8, 256], strides = [1, 1]} : vector<8x290xf32> to vector<8x256xf32>
    %cst = arith.constant 0.000000e+00 : f32
    %24 = vector.shape_cast %18 : vector<1x256xi1> to vector<1x256xi1>
    %25 = vector.broadcast %24 : vector<1x256xi1> to vector<8x256xi1>
    %26 = vector.broadcast %cst : f32 to vector<8x256xf32>
    %27 = arith.select %25, %23, %26 : vector<8x256xi1>, vector<8x256xf32>
    %28 = vector.extract_strided_slice %22 {offsets = [0, 1], sizes = [8, 256], strides = [1, 1]} : vector<8x290xf32> to vector<8x256xf32>
    %29 = vector.extract_strided_slice %22 {offsets = [0, 2], sizes = [8, 256], strides = [1, 1]} : vector<8x290xf32> to vector<8x256xf32>
    %cst_6 = arith.constant 0.000000e+00 : f32
    %30 = vector.shape_cast %20 : vector<1x256xi1> to vector<1x256xi1>
    %31 = vector.broadcast %30 : vector<1x256xi1> to vector<8x256xi1>
    %32 = vector.broadcast %cst_6 : f32 to vector<8x256xf32>
    %33 = arith.select %31, %29, %32 : vector<8x256xi1>, vector<8x256xf32>
    %34 = vector.extract_strided_slice %22 {offsets = [0, 16], sizes = [8, 256], strides = [1, 1]} : vector<8x290xf32> to vector<8x256xf32>
    %cst_7 = arith.constant 0.000000e+00 : f32
    %35 = vector.shape_cast %18 : vector<1x256xi1> to vector<1x256xi1>
    %36 = vector.broadcast %35 : vector<1x256xi1> to vector<8x256xi1>
    %37 = vector.broadcast %cst_7 : f32 to vector<8x256xf32>
    %38 = arith.select %36, %34, %37 : vector<8x256xi1>, vector<8x256xf32>
    %39 = vector.extract_strided_slice %22 {offsets = [0, 17], sizes = [8, 256], strides = [1, 1]} : vector<8x290xf32> to vector<8x256xf32>
    %40 = vector.extract_strided_slice %22 {offsets = [0, 18], sizes = [8, 256], strides = [1, 1]} : vector<8x290xf32> to vector<8x256xf32>
    %cst_8 = arith.constant 0.000000e+00 : f32
    %41 = vector.shape_cast %20 : vector<1x256xi1> to vector<1x256xi1>
    %42 = vector.broadcast %41 : vector<1x256xi1> to vector<8x256xi1>
    %43 = vector.broadcast %cst_8 : f32 to vector<8x256xf32>
    %44 = arith.select %42, %40, %43 : vector<8x256xi1>, vector<8x256xf32>
    %45 = vector.extract_strided_slice %22 {offsets = [0, 32], sizes = [8, 256], strides = [1, 1]} : vector<8x290xf32> to vector<8x256xf32>
    %cst_9 = arith.constant 0.000000e+00 : f32
    %46 = vector.shape_cast %18 : vector<1x256xi1> to vector<1x256xi1>
    %47 = vector.broadcast %46 : vector<1x256xi1> to vector<8x256xi1>
    %48 = vector.broadcast %cst_9 : f32 to vector<8x256xf32>
    %49 = arith.select %47, %45, %48 : vector<8x256xi1>, vector<8x256xf32>
    %50 = vector.extract_strided_slice %22 {offsets = [0, 33], sizes = [8, 256], strides = [1, 1]} : vector<8x290xf32> to vector<8x256xf32>
    %51 = vector.extract_strided_slice %22 {offsets = [0, 34], sizes = [8, 256], strides = [1, 1]} : vector<8x290xf32> to vector<8x256xf32>
    %cst_10 = arith.constant 0.000000e+00 : f32
    %52 = vector.shape_cast %20 : vector<1x256xi1> to vector<1x256xi1>
    %53 = vector.broadcast %52 : vector<1x256xi1> to vector<8x256xi1>
    %54 = vector.broadcast %cst_10 : f32 to vector<8x256xf32>
    %55 = arith.select %53, %51, %54 : vector<8x256xi1>, vector<8x256xf32>
    %56 = tpu.concatenate %27, %28, %33, %38, %39, %44, %49, %50, %55 in 0 : vector<8x256xf32>, vector<8x256xf32>, vector<8x256xf32>, vector<8x256xf32>, vector<8x256xf32>, vector<8x256xf32>, vector<8x256xf32>, vector<8x256xf32>, vector<8x256xf32> -> vector<72x256xf32>
    %c1 = arith.constant 1 : index
    %c0_11 = arith.constant 0 : index
    %c0_12 = arith.constant 0 : index
    %57 = vector.load %arg1[%c1, %c0_11, %c0_12] : memref<2x8x290xf32, #tpu.memory_space<vmem>>, vector<1x8x290xf32>
    %58 = vector.shape_cast %57 : vector<1x8x290xf32> to vector<8x290xf32>
    %59 = vector.extract_strided_slice %58 {offsets = [0, 0], sizes = [8, 256], strides = [1, 1]} : vector<8x290xf32> to vector<8x256xf32>
    %cst_13 = arith.constant 0.000000e+00 : f32
    %60 = vector.shape_cast %18 : vector<1x256xi1> to vector<1x256xi1>
    %61 = vector.broadcast %60 : vector<1x256xi1> to vector<8x256xi1>
    %62 = vector.broadcast %cst_13 : f32 to vector<8x256xf32>
    %63 = arith.select %61, %59, %62 : vector<8x256xi1>, vector<8x256xf32>
    %64 = vector.extract_strided_slice %58 {offsets = [0, 1], sizes = [8, 256], strides = [1, 1]} : vector<8x290xf32> to vector<8x256xf32>
    %65 = vector.extract_strided_slice %58 {offsets = [0, 2], sizes = [8, 256], strides = [1, 1]} : vector<8x290xf32> to vector<8x256xf32>
    %cst_14 = arith.constant 0.000000e+00 : f32
    %66 = vector.shape_cast %20 : vector<1x256xi1> to vector<1x256xi1>
    %67 = vector.broadcast %66 : vector<1x256xi1> to vector<8x256xi1>
    %68 = vector.broadcast %cst_14 : f32 to vector<8x256xf32>
    %69 = arith.select %67, %65, %68 : vector<8x256xi1>, vector<8x256xf32>
    %70 = vector.extract_strided_slice %58 {offsets = [0, 16], sizes = [8, 256], strides = [1, 1]} : vector<8x290xf32> to vector<8x256xf32>
    %cst_15 = arith.constant 0.000000e+00 : f32
    %71 = vector.shape_cast %18 : vector<1x256xi1> to vector<1x256xi1>
    %72 = vector.broadcast %71 : vector<1x256xi1> to vector<8x256xi1>
    %73 = vector.broadcast %cst_15 : f32 to vector<8x256xf32>
    %74 = arith.select %72, %70, %73 : vector<8x256xi1>, vector<8x256xf32>
    %75 = vector.extract_strided_slice %58 {offsets = [0, 17], sizes = [8, 256], strides = [1, 1]} : vector<8x290xf32> to vector<8x256xf32>
    %76 = vector.extract_strided_slice %58 {offsets = [0, 18], sizes = [8, 256], strides = [1, 1]} : vector<8x290xf32> to vector<8x256xf32>
    %cst_16 = arith.constant 0.000000e+00 : f32
    %77 = vector.shape_cast %20 : vector<1x256xi1> to vector<1x256xi1>
    %78 = vector.broadcast %77 : vector<1x256xi1> to vector<8x256xi1>
    %79 = vector.broadcast %cst_16 : f32 to vector<8x256xf32>
    %80 = arith.select %78, %76, %79 : vector<8x256xi1>, vector<8x256xf32>
    %81 = vector.extract_strided_slice %58 {offsets = [0, 32], sizes = [8, 256], strides = [1, 1]} : vector<8x290xf32> to vector<8x256xf32>
    %cst_17 = arith.constant 0.000000e+00 : f32
    %82 = vector.shape_cast %18 : vector<1x256xi1> to vector<1x256xi1>
    %83 = vector.broadcast %82 : vector<1x256xi1> to vector<8x256xi1>
    %84 = vector.broadcast %cst_17 : f32 to vector<8x256xf32>
    %85 = arith.select %83, %81, %84 : vector<8x256xi1>, vector<8x256xf32>
    %86 = vector.extract_strided_slice %58 {offsets = [0, 33], sizes = [8, 256], strides = [1, 1]} : vector<8x290xf32> to vector<8x256xf32>
    %87 = vector.extract_strided_slice %58 {offsets = [0, 34], sizes = [8, 256], strides = [1, 1]} : vector<8x290xf32> to vector<8x256xf32>
    %cst_18 = arith.constant 0.000000e+00 : f32
    %88 = vector.shape_cast %20 : vector<1x256xi1> to vector<1x256xi1>
    %89 = vector.broadcast %88 : vector<1x256xi1> to vector<8x256xi1>
    %90 = vector.broadcast %cst_18 : f32 to vector<8x256xf32>
    %91 = arith.select %89, %87, %90 : vector<8x256xi1>, vector<8x256xf32>
    %92 = tpu.concatenate %63, %64, %69, %74, %75, %80, %85, %86, %91 in 0 : vector<8x256xf32>, vector<8x256xf32>, vector<8x256xf32>, vector<8x256xf32>, vector<8x256xf32>, vector<8x256xf32>, vector<8x256xf32>, vector<8x256xf32>, vector<8x256xf32> -> vector<72x256xf32>
    %93 = tpu.concatenate %56, %92 in 1 : vector<72x256xf32>, vector<72x256xf32> -> vector<72x512xf32>
    %94 = arith.truncf %93 : vector<72x512xf32> to vector<72x512xbf16>
    %c0_19 = arith.constant 0 : index
    %c0_20 = arith.constant 0 : index
    %95 = vector.load %arg2[%c0_19, %c0_20] : memref<128x72xbf16, #tpu.memory_space<vmem>>, vector<128x72xbf16>
    %cst_21 = arith.constant dense<0.000000e+00> : vector<128x512xf32>
    %96 = tpu.matmul %95, %94, %cst_21 {dimension_numbers = #tpu.dot_dimension_numbers<[1], [0], [0], [1], [0, 0, 1, 1], [], []>} : vector<128x72xbf16>, vector<72x512xbf16>, vector<128x512xf32> -> vector<128x512xf32>
    %c0_22 = arith.constant 0 : index
    %c0_23 = arith.constant 0 : index
    %97 = vector.load %arg3[%c0_22, %c0_23] : memref<128x1xf32, #tpu.memory_space<vmem>>, vector<128x1xf32>
    %98 = vector.broadcast %97 : vector<128x1xf32> to vector<128x512xf32>
    %99 = arith.addf %96, %98 : vector<128x512xf32>
    %cst_24 = arith.constant 0.000000e+00 : f32
    %100 = vector.broadcast %cst_24 : f32 to vector<128x512xf32>
    %101 = arith.maximumf %99, %100 : vector<128x512xf32>
    %102 = vector.extract_strided_slice %101 {offsets = [0, 0], sizes = [128, 256], strides = [1, 1]} : vector<128x512xf32> to vector<128x256xf32>
    %c0_25 = arith.constant 0 : index
    %c0_26 = arith.constant 0 : index
    %c0_27 = arith.constant 0 : index
    %103 = vector.load %arg4[%c0_25, %c0_26, %c0_27] : memref<2x128x256xf32, #tpu.memory_space<vmem>>, vector<1x128x256xf32>
    %104 = vector.shape_cast %103 : vector<1x128x256xf32> to vector<128x256xf32>
    %105 = vector.shape_cast %102 : vector<128x256xf32> to vector<1x128x256xf32>
    tpu.vector_store %arg4[%c0_25, %c0_26, %c0_27], %105 {strides = array<i32>} : memref<2x128x256xf32, #tpu.memory_space<vmem>>, vector<1x128x256xf32>,
    %106 = vector.extract_strided_slice %101 {offsets = [0, 256], sizes = [128, 256], strides = [1, 1]} : vector<128x512xf32> to vector<128x256xf32>
    %c1_28 = arith.constant 1 : index
    %c0_29 = arith.constant 0 : index
    %c0_30 = arith.constant 0 : index
    %107 = vector.load %arg4[%c1_28, %c0_29, %c0_30] : memref<2x128x256xf32, #tpu.memory_space<vmem>>, vector<1x128x256xf32>
    %108 = vector.shape_cast %107 : vector<1x128x256xf32> to vector<128x256xf32>
    %109 = vector.shape_cast %106 : vector<128x256xf32> to vector<1x128x256xf32>
    tpu.vector_store %arg4[%c1_28, %c0_29, %c0_30], %109 {strides = array<i32>} : memref<2x128x256xf32, #tpu.memory_space<vmem>>, vector<1x128x256xf32>,
    return
  }
  func.func @transform_0(%arg0: i32) -> (i32, i32, i32) {
    %c0_i32 = arith.constant 0 : i32
    %c0_i32_0 = arith.constant 0 : i32
    %c0_i32_1 = arith.constant 0 : i32
    return %arg0, %c0_i32, %c0_i32_0 : i32, i32, i32
  }
  func.func @transform_1(%arg0: i32) -> (i32, i32) {
    %c0_i32 = arith.constant 0 : i32
    %c0_i32_0 = arith.constant 0 : i32
    %c0_i32_1 = arith.constant 0 : i32
    return %c0_i32, %c0_i32_0 : i32, i32
  }
  func.func @transform_2(%arg0: i32) -> (i32, i32) {
    %c0_i32 = arith.constant 0 : i32
    %c0_i32_0 = arith.constant 0 : i32
    %c0_i32_1 = arith.constant 0 : i32
    return %c0_i32, %c0_i32_0 : i32, i32
  }
  func.func @transform_3(%arg0: i32) -> (i32, i32, i32) {
    %c0_i32 = arith.constant 0 : i32
    %c0_i32_0 = arith.constant 0 : i32
    %c0_i32_1 = arith.constant 0 : i32
    return %arg0, %c0_i32, %c0_i32_0 : i32, i32, i32
  }
}

</mosaic_0001>

<llo_original>
// kernel: tpu_custom_call.1
$region0: #{tpu_custom_call.1}
  #allocation0 [shape = 'u32[]', space=smem, size = 0x4, offset = 0x4, fixed_abs, tag = 'smem constant byte address 0x4 - core index']
  #allocation1 [shape = 'u32[144,128]{1,0:T(1,128)}', space=vmem, size = 0x12000, scoped, tag = 'internal scratch']
  %s0 = inlined_call_operand.vmem [shape: f32[4,8,290], index: 0, kind: input, shape index: {}]
  %s1 = inlined_call_operand.vmem [shape: bf16[128,72], index: 1, kind: input, shape index: {}]
  %s2 = inlined_call_operand.vmem [shape: f32[128,1], index: 2, kind: input, shape index: {}]
  %s3 = inlined_call_operand.hbm [shape: f32[4,128,256], index: 3, kind: output, shape index: {}]
  %s4 = sld [smem:[#allocation0]]
  $region45: #{tpu_custom_call.1} parent=0
    _
  %s6 = ssub.s32 1, %s4
  %s7 = scalar_select 0, %s6, %s4
  $region1: #{tpu_custom_call.1} parent=0
    #allocation2 [shape = 'u8[524288]{0}', space=vmem, size = 0x80000, scoped, tag = 'output window, operand 0']
    #allocation3 [shape = 's32[2]{0}', space=sflag, size = 0x8, scoped, tag = 'scoped memory for tpu_custom_call.1']
    %8 = vsyncpa [#allocation3], 0
    %s9 = scalar_lea.sflag [#allocation3], 1
    %10 = vsyncpa %s9, 0
    loop: start=0, step=1, limit=4
    $region2: #{tpu_custom_call.1} parent=1 // loop_pre_header
      _
    $region3: #{tpu_custom_call.1} parent=1 // loop_header
      %s12 = sphi 0, %s16
      %p13 = scmp.ge.s32.totalorder %s12, 4
      %s22 = sphi 0, %s24
      %s25 = sphi 0, %s22
      %s26 = sphi 0, %s25
      %s42 = sphi 0, %s26
      %s46 = sphi 0, %s46
      %s48 = sphi 0, %s46
      %s49 = sphi 0, %s48
      %s63 = sphi 0, %s49
      %s67 = sphi 0, %s67
      %s69 = sphi 0, %s67
      %s70 = sphi 0, %s69
      %s84 = sphi 0, %s70
      %s90 = sphi 0, %s92
      %s93 = sphi 0, %s90
      %s94 = sphi 0, %s93
      %s110 = sphi 0, %s94
    $region4: #{tpu_custom_call.1} parent=1 // loop_header_branch
      %15 = sbr.rel (%p13) target = $region8
    $region5: #{tpu_custom_call.1} parent=1 // loop_body
      %s17 = ssub.s32 %s12, 1
      %s18 = ssub.s32 %s12, 2
      %s19 = sadd.s32 %s12, 1
      %s20 = ssub.s32 %s12, %s19
      %p21 = scmp.eq.s32.totalorder %s20, 0
      %s23 = sadd.s32 %s22, 1
      %s24 = scalar_select %p21, %s22, %s23
      %p27 = pneg %p21
      %p28 = scmp.eq.s32.totalorder %s12, 1
      %p29 = por %p27, %p28
      %p30 = scmp.ne.s32.totalorder %s22, %s25
      %p31 = scmp.eq.s32.totalorder %s12, 0
      %p32 = por %p30, %p31
      %p33 = scmp.ne.s32.totalorder %s22, %s25
      %p34 = scmp.eq.s32.totalorder %s17, 1
      %p35 = por %p33, %p34
      %p36 = scmp.ne.s32.totalorder %s25, %s26
      %p37 = scmp.eq.s32.totalorder %s17, 0
      %p38 = por %p36, %p37
      %p39 = scmp.ne.s32.totalorder %s25, %s26
      %p40 = scmp.eq.s32.totalorder %s18, 1
      %p41 = por %p39, %p40
      %p43 = scmp.ne.s32.totalorder %s26, %s42
      %p44 = scmp.eq.s32.totalorder %s18, 0
      %p45 = por %p43, %p44
      %s47 = sadd.s32 %s46, 1
      %p50 = scmp.eq.s32.totalorder %s12, 1
      %p51 = scmp.ne.s32.totalorder %s46, %s48
      %p52 = scmp.eq.s32.totalorder %s12, 0
      %p53 = por %p51, %p52
      %p54 = scmp.ne.s32.totalorder %s46, %s48
      %p55 = scmp.eq.s32.totalorder %s17, 1
      %p56 = por %p54, %p55
      %p57 = scmp.ne.s32.totalorder %s48, %s49
      %p58 = scmp.eq.s32.totalorder %s17, 0
      %p59 = por %p57, %p58
      %p60 = scmp.ne.s32.totalorder %s48, %s49
      %p61 = scmp.eq.s32.totalorder %s18, 1
      %p62 = por %p60, %p61
      %p64 = scmp.ne.s32.totalorder %s49, %s63
      %p65 = scmp.eq.s32.totalorder %s18, 0
      %p66 = por %p64, %p65
      %s68 = sadd.s32 %s67, 1
      %p71 = scmp.eq.s32.totalorder %s12, 1
      %p72 = scmp.ne.s32.totalorder %s67, %s69
      %p73 = scmp.eq.s32.totalorder %s12, 0
      %p74 = por %p72, %p73
      %p75 = scmp.ne.s32.totalorder %s67, %s69
      %p76 = scmp.eq.s32.totalorder %s17, 1
      %p77 = por %p75, %p76
      %p78 = scmp.ne.s32.totalorder %s69, %s70
      %p79 = scmp.eq.s32.totalorder %s17, 0
      %p80 = por %p78, %p79
      %p81 = scmp.ne.s32.totalorder %s69, %s70
      %p82 = scmp.eq.s32.totalorder %s18, 1
      %p83 = por %p81, %p82
      %p85 = scmp.ne.s32.totalorder %s70, %s84
      %p86 = scmp.eq.s32.totalorder %s18, 0
      %p87 = por %p85, %p86
      %s88 = ssub.s32 %s12, %s19
      %p89 = scmp.eq.s32.totalorder %s88, 0
      %s91 = sadd.s32 %s90, 1
      %s92 = scalar_select %p89, %s90, %s91
      %p95 = pneg %p89
      %p96 = scmp.eq.s32.totalorder %s12, 1
      %p97 = por %p95, %p96
      %p98 = scmp.ne.s32.totalorder %s90, %s93
      %p99 = scmp.eq.s32.totalorder %s12, 0
      %p100 = por %p98, %p99
      %p101 = scmp.ne.s32.totalorder %s90, %s93
      %p102 = scmp.eq.s32.totalorder %s17, 1
      %p103 = por %p101, %p102
      %p104 = scmp.ne.s32.totalorder %s93, %s94
      %p105 = scmp.eq.s32.totalorder %s17, 0
      %p106 = por %p104, %p105
      %p107 = scmp.ne.s32.totalorder %s93, %s94
      %p108 = scmp.eq.s32.totalorder %s18, 1
      %p109 = por %p107, %p108
      %p111 = scmp.ne.s32.totalorder %s94, %s110
      %p112 = scmp.eq.s32.totalorder %s18, 0
      %p113 = por %p111, %p112
      %p114 = scmp.le.s32.totalorder 1, %s12
      %p115 = scmp.lt.s32.totalorder %s12, 3
      %p116 = pnand %p114, %p115
      %p117 = pneg %p116
      // Predicated region
      $region9: #{tpu_custom_call.1} parent=5 // pred_check
        _
      $region10: #{tpu_custom_call.1} parent=5 // pred_check_branch
        %119 = sbr.rel (%p116) target = $region12
      $region11: #{tpu_custom_call.1} parent=5 // pred_region
        %s120 = ssub.s32 %s12, 1
        // Predicated region
        $region13: #{tpu_custom_call.1} parent=11 // pred_check
          %p121 = pneg %p59
        $region14: #{tpu_custom_call.1} parent=11 // pred_check_branch
          %123 = sbr.rel (%p121) target = $region16
        $region15: #{tpu_custom_call.1} parent=11 // pred_region
          _
        $region16: #{tpu_custom_call.1} parent=11 // pred_fallthru
          _
        // Predicated region
        $region17: #{tpu_custom_call.1} parent=11 // pred_check
          %p124 = pneg %p80
        $region18: #{tpu_custom_call.1} parent=11 // pred_check_branch
          %126 = sbr.rel (%p124) target = $region20
        $region19: #{tpu_custom_call.1} parent=11 // pred_region
          _
        $region20: #{tpu_custom_call.1} parent=11 // pred_fallthru
          _
      $region12: #{tpu_custom_call.1} parent=5 // pred_fallthru
        _
      %p127 = scmp.lt.s32.totalorder %s12, 2
      // Predicated region
      $region21: #{tpu_custom_call.1} parent=5 // pred_check
        %p128 = pneg %p127
      $region22: #{tpu_custom_call.1} parent=5 // pred_check_branch
        %130 = sbr.rel (%p128) target = $region24
      $region23: #{tpu_custom_call.1} parent=5 // pred_region
        // Predicated region
        $region25: #{tpu_custom_call.1} parent=23 // pred_check
          %p131 = pneg %p32
        $region26: #{tpu_custom_call.1} parent=23 // pred_check_branch
          %133 = sbr.rel (%p131) target = $region28
        $region27: #{tpu_custom_call.1} parent=23 // pred_region
          %s134 = smul.u32 2, %s12
          %p135 = scmp.lt.s32.totalorder %s134, 3
          %s136 = scalar_select %p135, %s134, 3
          %s137 = smul.addr %s136, 3
          %s138 = smul.addr %s137, 8
          %s139 = scalar_lea.vmem %s0, %s138
          %s140 = smul.u32 2, %s12
        $region28: #{tpu_custom_call.1} parent=23 // pred_fallthru
          _
      $region24: #{tpu_custom_call.1} parent=5 // pred_fallthru
        _
      %p141 = scmp.le.s32.totalorder 1, %s12
      %p142 = scmp.lt.s32.totalorder %s12, 3
      %p143 = pnand %p141, %p142
      %p144 = pneg %p143
      // Predicated region
      $region29: #{tpu_custom_call.1} parent=5 // pred_check
        _
      $region30: #{tpu_custom_call.1} parent=5 // pred_check_branch
        %146 = sbr.rel (%p143) target = $region32
      $region31: #{tpu_custom_call.1} parent=5 // pred_region
        %s147 = ssub.s32 %s12, 1
        %s148 = smul.u32 2, %s17
        %p149 = scmp.lt.s32.totalorder %s148, 3
        %s150 = scalar_select %p149, %s148, 3
        %s151 = smul.addr %s150, 3
        %s152 = smul.addr %s151, 8
        %s153 = scalar_lea.vmem %s0, %s152
        %p154 = pneg %p38
        %p155 = pneg %p35
        %p156 = pneg %p59
        %p157 = pneg %p56
        %p158 = pneg %p80
        %p159 = pneg %p77
        %p160 = pneg %p106
        %p161 = pneg %p103
        %s162 = sand.u32 %s93, 1
        %s163 = scalar_lea.sflag [#allocation3], %s162
        %s164 = sand.u32 %s93, 1
        %s165 = smul.addr %s164, 512
        %s166 = scalar_lea.vmem [#allocation2], %s165
        %s167 = smul.u32 2, %s17
        %p168 = scmp.lt.s32.totalorder %s167, 3
        %s169 = scalar_select %p168, %s167, 3
        %s170 = smul.addr %s169, 3
        %s171 = smul.addr %s170, 8
        %s172 = scalar_lea.vmem %s0, %s171
        %s173 = smul.u32 2, %s17
        %s174 = smul.u32 2, %s17
        %v176 = vlaneseq
        %v177 = vand.u32 %v176, 127
        %v178 = vadd.s32 %v177, 128
        %vm179 = vcmp.lt.s32.totalorder %v177, 0
        %v180 = vsub.s32 0, %v177
        %v181 = vsel %vm179, %v180, %v177
        %v182 = vshrl.u32 %v181, 4
        %v183 = vand.u32 %v181, 15
        %v184 = vsub.s32 0, %v183
        %v185 = vsel %vm179, %v184, %v183
        %vm186 = vcmp.lt.s32.totalorder %v178, 0
        %v187 = vsub.s32 0, %v178
        %v188 = vsel %vm186, %v187, %v178
        %v189 = vshrl.u32 %v188, 4
        %v190 = vand.u32 %v188, 15
        %v191 = vsub.s32 0, %v190
        %v192 = vsel %vm186, %v191, %v190
        %vm193 = vcmp.ne.s32.totalorder %v185, 0
        %vm194 = vcmp.ne.s32.totalorder %v192, 0
        %vm195 = vcmp.lt.s32.totalorder %v185, 0
        %vm196 = vcmp.lt.s32.totalorder %v192, 0
        %vm197 = vmand %vm195, %vm193
        %vm198 = vmand %vm196, %vm194
        %v199 = vadd.s32 %v185, 16
        %v200 = vadd.s32 %v192, 16
        %v201 = vsel %vm197, %v199, %v185
        %v202 = vsel %vm198, %v200, %v192
        %vm203 = vcmp.ne.s32.totalorder %v201, 0
        %vm204 = vcmp.ne.s32.totalorder %v202, 0
        %vm205 = vcmp.ne.s32.totalorder %v201, 15
        %vm206 = vcmp.ne.s32.totalorder %v202, 15
        %v207 = vld [vmem:[%s172] sm:$0xff]
        %v208 = vld [vmem:[%s172 + $0x8] sm:$0xff]
        %v209 = vld [vmem:[%s172 + $0x10] sm:$0xff]
        %v210 = vsel %vm203, 1, 0
        %v211 = vsel %vm204, 1, 0
        %vm212 = vcmp.eq.s32.totalorder %v210, 1
        %vm213 = vcmp.eq.s32.totalorder %v211, 1
        %v214 = vsel %vm212, %v207, 0.0
        %v215 = vsel %vm213, %v208, 0.0
        %v216 = vsel %vm205, 1, 0
        %v217 = vsel %vm206, 1, 0
        %vm218 = vcmp.eq.s32.totalorder %v216, 1
        %vm219 = vcmp.eq.s32.totalorder %v217, 1
        %223 = vrot.lane.b32.xlu0 %v207, 126
        %v224 = vpop.permute.xlu0 %223
        %225 = vrot.lane.b32.xlu0 %v208, 126
        %v226 = vpop.permute.xlu0 %225
        %227 = vrot.lane.b32.xlu0 %v209, 126
        %v228 = vpop.permute.xlu0 %227
        %vm229 = vcmask 1031168
        %v230 = vsel %vm229, %v224, %v226
        %v231 = vsel %vm229, %v226, %v228
        %v234 = vsel %vm218, %v230, 0.0
        %v235 = vsel %vm219, %v231, 0.0
        %236 = vrot.lane.b32.xlu0 %v207, 112
        %v237 = vpop.permute.xlu0 %236
        %238 = vrot.lane.b32.xlu0 %v208, 112
        %v239 = vpop.permute.xlu0 %238
        %240 = vrot.lane.b32.xlu0 %v209, 112
        %v241 = vpop.permute.xlu0 %240
        %vm242 = vcmask 916480
        %v243 = vsel %vm242, %v237, %v239
        %v244 = vsel %vm242, %v239, %v241
        %v247 = vsel %vm212, %v243, 0.0
        %v248 = vsel %vm213, %v244, 0.0
        %249 = vrot.lane.b32.xlu0 %v207, 110
        %v250 = vpop.permute.xlu0 %249
        %251 = vrot.lane.b32.xlu0 %v208, 110
        %v252 = vpop.permute.xlu0 %251
        %253 = vrot.lane.b32.xlu0 %v209, 110
        %v254 = vpop.permute.xlu0 %253
        %vm255 = vcmask 900096
        %v256 = vsel %vm255, %v250, %v252
        %v257 = vsel %vm255, %v252, %v254
        %v260 = vsel %vm218, %v256, 0.0
        %v261 = vsel %vm219, %v257, 0.0
        %262 = vrot.lane.b32.xlu0 %v207, 96
        %v263 = vpop.permute.xlu0 %262
        %264 = vrot.lane.b32.xlu0 %v208, 96
        %v265 = vpop.permute.xlu0 %264
        %266 = vrot.lane.b32.xlu0 %v209, 96
        %v267 = vpop.permute.xlu0 %266
        %vm268 = vcmask 785408
        %v269 = vsel %vm268, %v263, %v265
        %v270 = vsel %vm268, %v265, %v267
        %v273 = vsel %vm212, %v269, 0.0
        %v274 = vsel %vm213, %v270, 0.0
        %275 = vrot.lane.b32.xlu0 %v207, 94
        %v276 = vpop.permute.xlu0 %275
        %277 = vrot.lane.b32.xlu0 %v208, 94
        %v278 = vpop.permute.xlu0 %277
        %279 = vrot.lane.b32.xlu0 %v209, 94
        %v280 = vpop.permute.xlu0 %279
        %vm281 = vcmask 769024
        %v282 = vsel %vm281, %v276, %v278
        %v283 = vsel %vm281, %v278, %v280
        %v286 = vsel %vm218, %v282, 0.0
        %v287 = vsel %vm219, %v283, 0.0
        %288 = vrot.lane.b32.xlu0 %v207, 127
        %v289 = vpop.permute.xlu0 %288
        %290 = vrot.lane.b32.xlu0 %v208, 127
        %v291 = vpop.permute.xlu0 %290
        %292 = vrot.lane.b32.xlu0 %v209, 127
        %v293 = vpop.permute.xlu0 %292
        %vm294 = vcmask 1039360
        %v295 = vsel %vm294, %v289, %v291
        %v296 = vsel %vm294, %v291, %v293
        %299 = vrot.lane.b32.xlu0 %v207, 111
        %v300 = vpop.permute.xlu0 %299
        %301 = vrot.lane.b32.xlu0 %v208, 111
        %v302 = vpop.permute.xlu0 %301
        %303 = vrot.lane.b32.xlu0 %v209, 111
        %v304 = vpop.permute.xlu0 %303
        %vm305 = vcmask 908288
        %v306 = vsel %vm305, %v300, %v302
        %v307 = vsel %vm305, %v302, %v304
        %310 = vrot.lane.b32.xlu0 %v207, 95
        %v311 = vpop.permute.xlu0 %310
        %312 = vrot.lane.b32.xlu0 %v208, 95
        %v313 = vpop.permute.xlu0 %312
        %314 = vrot.lane.b32.xlu0 %v209, 95
        %v315 = vpop.permute.xlu0 %314
        %vm316 = vcmask 777216
        %v317 = vsel %vm316, %v311, %v313
        %v318 = vsel %vm316, %v313, %v315
        %s321 = scalar_lea.vmem %s172, 24
        %v322 = vld [vmem:[%s321] sm:$0xff]
        %v323 = vld [vmem:[%s321 + $0x8] sm:$0xff]
        %v324 = vld [vmem:[%s321 + $0x10] sm:$0xff]
        %v325 = vsel %vm212, %v322, 0.0
        %v326 = vsel %vm213, %v323, 0.0
        %330 = vrot.lane.b32.xlu0 %v322, 126
        %v331 = vpop.permute.xlu0 %330
        %332 = vrot.lane.b32.xlu0 %v323, 126
        %v333 = vpop.permute.xlu0 %332
        %334 = vrot.lane.b32.xlu0 %v324, 126
        %v335 = vpop.permute.xlu0 %334
        %v336 = vsel %vm229, %v331, %v333
        %v337 = vsel %vm229, %v333, %v335
        %v340 = vsel %vm218, %v336, 0.0
        %v341 = vsel %vm219, %v337, 0.0
        %342 = vrot.lane.b32.xlu0 %v322, 112
        %v343 = vpop.permute.xlu0 %342
        %344 = vrot.lane.b32.xlu0 %v323, 112
        %v345 = vpop.permute.xlu0 %344
        %346 = vrot.lane.b32.xlu0 %v324, 112
        %v347 = vpop.permute.xlu0 %346
        %v348 = vsel %vm242, %v343, %v345
        %v349 = vsel %vm242, %v345, %v347
        %v352 = vsel %vm212, %v348, 0.0
        %v353 = vsel %vm213, %v349, 0.0
        %354 = vrot.lane.b32.xlu0 %v322, 110
        %v355 = vpop.permute.xlu0 %354
        %356 = vrot.lane.b32.xlu0 %v323, 110
        %v357 = vpop.permute.xlu0 %356
        %358 = vrot.lane.b32.xlu0 %v324, 110
        %v359 = vpop.permute.xlu0 %358
        %v360 = vsel %vm255, %v355, %v357
        %v361 = vsel %vm255, %v357, %v359
        %v364 = vsel %vm218, %v360, 0.0
        %v365 = vsel %vm219, %v361, 0.0
        %366 = vrot.lane.b32.xlu0 %v322, 96
        %v367 = vpop.permute.xlu0 %366
        %368 = vrot.lane.b32.xlu0 %v323, 96
        %v369 = vpop.permute.xlu0 %368
        %370 = vrot.lane.b32.xlu0 %v324, 96
        %v371 = vpop.permute.xlu0 %370
        %v372 = vsel %vm268, %v367, %v369
        %v373 = vsel %vm268, %v369, %v371
        %v376 = vsel %vm212, %v372, 0.0
        %v377 = vsel %vm213, %v373, 0.0
        %378 = vrot.lane.b32.xlu0 %v322, 94
        %v379 = vpop.permute.xlu0 %378
        %380 = vrot.lane.b32.xlu0 %v323, 94
        %v381 = vpop.permute.xlu0 %380
        %382 = vrot.lane.b32.xlu0 %v324, 94
        %v383 = vpop.permute.xlu0 %382
        %v384 = vsel %vm281, %v379, %v381
        %v385 = vsel %vm281, %v381, %v383
        %v388 = vsel %vm218, %v384, 0.0
        %v389 = vsel %vm219, %v385, 0.0
        %390 = vrot.lane.b32.xlu0 %v322, 127
        %v391 = vpop.permute.xlu0 %390
        %392 = vrot.lane.b32.xlu0 %v323, 127
        %v393 = vpop.permute.xlu0 %392
        %394 = vrot.lane.b32.xlu0 %v324, 127
        %v395 = vpop.permute.xlu0 %394
        %v396 = vsel %vm294, %v391, %v393
        %v397 = vsel %vm294, %v393, %v395
        %400 = vrot.lane.b32.xlu0 %v322, 111
        %v401 = vpop.permute.xlu0 %400
        %402 = vrot.lane.b32.xlu0 %v323, 111
        %v403 = vpop.permute.xlu0 %402
        %404 = vrot.lane.b32.xlu0 %v324, 111
        %v405 = vpop.permute.xlu0 %404
        %v406 = vsel %vm305, %v401, %v403
        %v407 = vsel %vm305, %v403, %v405
        %410 = vrot.lane.b32.xlu0 %v322, 95
        %v411 = vpop.permute.xlu0 %410
        %412 = vrot.lane.b32.xlu0 %v323, 95
        %v413 = vpop.permute.xlu0 %412
        %414 = vrot.lane.b32.xlu0 %v324, 95
        %v415 = vpop.permute.xlu0 %414
        %v416 = vsel %vm316, %v411, %v413
        %v417 = vsel %vm316, %v413, %v415
        %v420 = vpack.c.bf16 %v295, %v214
        %v421 = vpack.c.bf16 %v296, %v215
        %v422 = vpack.c.bf16 %v396, %v325
        %v423 = vpack.c.bf16 %v397, %v326
        %v424 = vpack.c.bf16 %v247, %v234
        %v425 = vpack.c.bf16 %v248, %v235
        %v426 = vpack.c.bf16 %v352, %v340
        %v427 = vpack.c.bf16 %v353, %v341
        %v428 = vpack.c.bf16 %v260, %v306
        %v429 = vpack.c.bf16 %v261, %v307
        %v430 = vpack.c.bf16 %v364, %v406
        %v431 = vpack.c.bf16 %v365, %v407
        %v432 = vpack.c.bf16 %v317, %v273
        %v433 = vpack.c.bf16 %v318, %v274
        %v434 = vpack.c.bf16 %v416, %v376
        %v435 = vpack.c.bf16 %v417, %v377
        %v436 = vpack.c.bf16 %v286, %v286
        %v437 = vpack.c.bf16 %v287, %v287
        %v438 = vpack.c.bf16 %v388, %v388
        %v439 = vpack.c.bf16 %v389, %v389
        %v440 = vld [vmem:[%s1] sm:$0xf]
        %v441 = vld [vmem:[%s1 + $0x4] sm:$0xf]
        %v442 = vld [vmem:[%s1 + $0x8] sm:$0xf]
        %v443 = vld [vmem:[%s1 + $0xc] sm:$0xf]
        %v444 = vld [vmem:[%s1 + $0x10] sm:$0xf]
        %v445 = vld [vmem:[%s1 + $0x14] sm:$0xf]
        %v446 = vld [vmem:[%s1 + $0x18] sm:$0xf]
        %v447 = vld [vmem:[%s1 + $0x1c] sm:$0xf]
        %v448 = vld [vmem:[%s1 + $0x20] sm:$0xf]
        %v449 = vld [vmem:[%s1 + $0x24] sm:$0xf]
        %v450 = vld [vmem:[%s1 + $0x28] sm:$0xf]
        %v451 = vld [vmem:[%s1 + $0x2c] sm:$0xf]
        %v452 = vld [vmem:[%s1 + $0x30] sm:$0xf]
        %v453 = vld [vmem:[%s1 + $0x34] sm:$0xf]
        %v454 = vld [vmem:[%s1 + $0x38] sm:$0xf]
        %v455 = vld [vmem:[%s1 + $0x3c] sm:$0xf]
        %v456 = vld [vmem:[%s2] sm:$0xff]
        %v457 = vld [vmem:[%s2 + $0x8] sm:$0xff]
        %v458 = vld [vmem:[%s2 + $0x10] sm:$0xff]
        %v459 = vld [vmem:[%s2 + $0x18] sm:$0xff]
        %v460 = vld [vmem:[%s2 + $0x20] sm:$0xff]
        %v461 = vld [vmem:[%s2 + $0x28] sm:$0xff]
        %v462 = vld [vmem:[%s2 + $0x30] sm:$0xff]
        %v463 = vld [vmem:[%s2 + $0x38] sm:$0xff]
        %v464 = vld [vmem:[%s2 + $0x40] sm:$0xff]
        %v465 = vld [vmem:[%s2 + $0x48] sm:$0xff]
        %v466 = vld [vmem:[%s2 + $0x50] sm:$0xff]
        %v467 = vld [vmem:[%s2 + $0x58] sm:$0xff]
        %v468 = vld [vmem:[%s2 + $0x60] sm:$0xff]
        %v469 = vld [vmem:[%s2 + $0x68] sm:$0xff]
        %v470 = vld [vmem:[%s2 + $0x70] sm:$0xff]
        %v471 = vld [vmem:[%s2 + $0x78] sm:$0xff]
        %473 = vset.pattern.permute.xlu0 0
        %474 = vperm.xlu0 %473, %v456
        %v475 = vpop.permute.xlu0 %474
        %478 = vset.pattern.permute.xlu0 0
        %479 = vperm.xlu0 %478, %v457
        %v480 = vpop.permute.xlu0 %479
        %483 = vset.pattern.permute.xlu0 0
        %484 = vperm.xlu0 %483, %v458
        %v485 = vpop.permute.xlu0 %484
        %488 = vset.pattern.permute.xlu0 0
        %489 = vperm.xlu0 %488, %v459
        %v490 = vpop.permute.xlu0 %489
        %493 = vset.pattern.permute.xlu0 0
        %494 = vperm.xlu0 %493, %v460
        %v495 = vpop.permute.xlu0 %494
        %498 = vset.pattern.permute.xlu0 0
        %499 = vperm.xlu0 %498, %v461
        %v500 = vpop.permute.xlu0 %499
        %503 = vset.pattern.permute.xlu0 0
        %504 = vperm.xlu0 %503, %v462
        %v505 = vpop.permute.xlu0 %504
        %508 = vset.pattern.permute.xlu0 0
        %509 = vperm.xlu0 %508, %v463
        %v510 = vpop.permute.xlu0 %509
        %513 = vset.pattern.permute.xlu0 0
        %514 = vperm.xlu0 %513, %v464
        %v515 = vpop.permute.xlu0 %514
        %518 = vset.pattern.permute.xlu0 0
        %519 = vperm.xlu0 %518, %v465
        %v520 = vpop.permute.xlu0 %519
        %523 = vset.pattern.permute.xlu0 0
        %524 = vperm.xlu0 %523, %v466
        %v525 = vpop.permute.xlu0 %524
        %528 = vset.pattern.permute.xlu0 0
        %529 = vperm.xlu0 %528, %v467
        %v530 = vpop.permute.xlu0 %529
        %533 = vset.pattern.permute.xlu0 0
        %534 = vperm.xlu0 %533, %v468
        %v535 = vpop.permute.xlu0 %534
        %538 = vset.pattern.permute.xlu0 0
        %539 = vperm.xlu0 %538, %v469
        %v540 = vpop.permute.xlu0 %539
        %543 = vset.pattern.permute.xlu0 0
        %544 = vperm.xlu0 %543, %v470
        %v545 = vpop.permute.xlu0 %544
        %548 = vset.pattern.permute.xlu0 0
        %549 = vperm.xlu0 %548, %v471
        %v550 = vpop.permute.xlu0 %549
        %v568 = vunpack.c.l.b16 %v440
        %v569 = vunpack.c.l.b16 %v441
        %v570 = vunpack.c.l.b16 %v442
        %v571 = vunpack.c.l.b16 %v443
        %v572 = vunpack.c.l.b16 %v444
        %v573 = vunpack.c.l.b16 %v445
        %v574 = vunpack.c.l.b16 %v446
        %v575 = vunpack.c.l.b16 %v447
        %v576 = vunpack.c.l.b16 %v448
        %v577 = vunpack.c.l.b16 %v449
        %v578 = vunpack.c.l.b16 %v450
        %v579 = vunpack.c.l.b16 %v451
        %v580 = vunpack.c.l.b16 %v452
        %v581 = vunpack.c.l.b16 %v453
        %v582 = vunpack.c.l.b16 %v454
        %v583 = vunpack.c.l.b16 %v455
        %v584 = vpack.c.b16 %v569, %v568
        %v585 = vpack.c.b16 %v571, %v570
        %v586 = vpack.c.b16 %v573, %v572
        %v587 = vpack.c.b16 %v575, %v574
        %v588 = vpack.c.b16 %v577, %v576
        %v589 = vpack.c.b16 %v579, %v578
        %v590 = vpack.c.b16 %v581, %v580
        %v591 = vpack.c.b16 %v583, %v582
        %vm592 = vcmask 588800
        %v594 = vsel %vm592, %v584, 0
        %v597 = vsel %vm592, %v585, 0
        %v600 = vsel %vm592, %v586, 0
        %v603 = vsel %vm592, %v587, 0
        %v606 = vsel %vm592, %v588, 0
        %v609 = vsel %vm592, %v589, 0
        %v612 = vsel %vm592, %v590, 0
        %v615 = vsel %vm592, %v591, 0
        %vm617 = vcmask 1043456
        %v619 = vsel %vm617, %v436, 0
        %v622 = vsel %vm617, %v437, 0
        %v625 = vsel %vm617, %v438, 0
        %v628 = vsel %vm617, %v439, 0
        %630 = vmatprep.subr.bf16.mxu0 %v421
        %631 = vmatpush1.bf16.msra.mxu0 %v420
        %632 = vmatprep.subr.bf16.mxu0 %v425
        %633 = vmatpush1.bf16.msra.mxu0 %v424
        %634 = vmatprep.subr.bf16.mxu0 %v429
        %635 = vmatpush1.bf16.msra.mxu0 %v428
        %636 = vmatprep.subr.bf16.mxu0 %v433
        %637 = vmatpush1.bf16.msra.mxu0 %v432
        %638 = vmatprep.subr.bf16.mxu0 %v622
        %639 = vmatpush1.bf16.msra.mxu0 %v619
        %640 = vmatprep.subr.bf16.mxu0 0
        %641 = vmatpush1.bf16.msra.mxu0 0
        %642 = vmatprep.subr.bf16.mxu0 0
        %643 = vmatpush1.bf16.msra.mxu0 0
        %644 = vmatprep.subr.bf16.mxu0 0
        %645 = vmatpush1.bf16.msra.mxu0 0
        %646 = vmatprep.subr.bf16.mxu0 0
        %647 = vmatpush1.bf16.msra.mxu0 0
        %648 = vmatprep.subr.bf16.mxu0 0
        %649 = vmatpush1.bf16.msra.mxu0 0
        %650 = vmatprep.subr.bf16.mxu0 0
        %651 = vmatpush1.bf16.msra.mxu0 0
        %652 = vmatprep.subr.bf16.mxu0 0
        %653 = vmatpush1.bf16.msra.mxu0 0
        %654 = vmatprep.subr.bf16.mxu0 0
        %655 = vmatpush1.bf16.msra.mxu0 0
        %656 = vmatprep.subr.bf16.mxu0 0
        %657 = vmatpush1.bf16.msra.mxu0 0
        %658 = vmatprep.subr.bf16.mxu0 0
        %659 = vmatpush1.bf16.msra.mxu0 0
        %660 = vmatprep.subr.bf16.mxu0 0
        %661 = vmatpush1.bf16.msra.mxu0 0
        %662 = vmatprep.mubr.bf16.mxu0 0
        %663 = vmatmul.mubr.bf16.gmra.mrb[0].mxu0 %v594
        %v664 = vpop.f32.mrb[0].mxu0
        %v665 = vadd.f32 %v475, %v664
        %v666 = vpop.f32.mrb[0].mxu0
        %v667 = vadd.f32 %v475, %v666
        %v668 = vpop.f32.mrb[0].mxu0
        %v669 = vadd.f32 %v480, %v668
        %v670 = vpop.f32.mrb[0].mxu0
        %v671 = vadd.f32 %v480, %v670
        %672 = vmatprep.mubr.bf16.mxu0 0
        %673 = vmatmul.mubr.bf16.gmra.mrb[0].mxu0 %v597
        %v674 = vpop.f32.mrb[0].mxu0
        %v675 = vadd.f32 %v485, %v674
        %v676 = vpop.f32.mrb[0].mxu0
        %v677 = vadd.f32 %v485, %v676
        %v678 = vpop.f32.mrb[0].mxu0
        %v679 = vadd.f32 %v490, %v678
        %v680 = vpop.f32.mrb[0].mxu0
        %v681 = vadd.f32 %v490, %v680
        %682 = vmatprep.mubr.bf16.mxu0 0
        %683 = vmatmul.mubr.bf16.gmra.mrb[0].mxu0 %v600
        %v684 = vpop.f32.mrb[0].mxu0
        %v685 = vadd.f32 %v495, %v684
        %v686 = vpop.f32.mrb[0].mxu0
        %v687 = vadd.f32 %v495, %v686
        %v688 = vpop.f32.mrb[0].mxu0
        %v689 = vadd.f32 %v500, %v688
        %v690 = vpop.f32.mrb[0].mxu0
        %v691 = vadd.f32 %v500, %v690
        %692 = vmatprep.mubr.bf16.mxu0 0
        %693 = vmatmul.mubr.bf16.gmra.mrb[0].mxu0 %v603
        %v694 = vpop.f32.mrb[0].mxu0
        %v695 = vadd.f32 %v505, %v694
        %v696 = vpop.f32.mrb[0].mxu0
        %v697 = vadd.f32 %v505, %v696
        %v698 = vpop.f32.mrb[0].mxu0
        %v699 = vadd.f32 %v510, %v698
        %v700 = vpop.f32.mrb[0].mxu0
        %v701 = vadd.f32 %v510, %v700
        %702 = vmatprep.mubr.bf16.mxu0 0
        %703 = vmatmul.mubr.bf16.gmra.mrb[0].mxu0 %v606
        %v704 = vpop.f32.mrb[0].mxu0
        %v705 = vadd.f32 %v515, %v704
        %v706 = vpop.f32.mrb[0].mxu0
        %v707 = vadd.f32 %v515, %v706
        %v708 = vpop.f32.mrb[0].mxu0
        %v709 = vadd.f32 %v520, %v708
        %v710 = vpop.f32.mrb[0].mxu0
        %v711 = vadd.f32 %v520, %v710
        %712 = vmatprep.mubr.bf16.mxu0 0
        %713 = vmatmul.mubr.bf16.gmra.mrb[0].mxu0 %v609
        %v714 = vpop.f32.mrb[0].mxu0
        %v715 = vadd.f32 %v525, %v714
        %v716 = vpop.f32.mrb[0].mxu0
        %v717 = vadd.f32 %v525, %v716
        %v718 = vpop.f32.mrb[0].mxu0
        %v719 = vadd.f32 %v530, %v718
        %v720 = vpop.f32.mrb[0].mxu0
        %v721 = vadd.f32 %v530, %v720
        %722 = vmatprep.mubr.bf16.mxu0 0
        %723 = vmatmul.mubr.bf16.gmra.mrb[0].mxu0 %v612
        %v724 = vpop.f32.mrb[0].mxu0
        %v725 = vadd.f32 %v535, %v724
        %v726 = vpop.f32.mrb[0].mxu0
        %v727 = vadd.f32 %v535, %v726
        %v728 = vpop.f32.mrb[0].mxu0
        %v729 = vadd.f32 %v540, %v728
        %v730 = vpop.f32.mrb[0].mxu0
        %v731 = vadd.f32 %v540, %v730
        %732 = vmatprep.mubr.bf16.mxu0 0
        %733 = vmatmul.mubr.bf16.gmra.mrb[0].mxu0 %v615
        %v734 = vpop.f32.mrb[0].mxu0
        %v735 = vadd.f32 %v545, %v734
        %v736 = vpop.f32.mrb[0].mxu0
        %v737 = vadd.f32 %v545, %v736
        %v738 = vpop.f32.mrb[0].mxu0
        %v739 = vadd.f32 %v550, %v738
        %v740 = vpop.f32.mrb[0].mxu0
        %v741 = vadd.f32 %v550, %v740
        %742 = vdwg.mxu0
        %743 = vmatprep.subr.bf16.mxu0 %v423
        %744 = vmatpush1.bf16.msra.mxu0 %v422
        %745 = vmatprep.subr.bf16.mxu0 %v427
        %746 = vmatpush1.bf16.msra.mxu0 %v426
        %747 = vmatprep.subr.bf16.mxu0 %v431
        %748 = vmatpush1.bf16.msra.mxu0 %v430
        %749 = vmatprep.subr.bf16.mxu0 %v435
        %750 = vmatpush1.bf16.msra.mxu0 %v434
        %751 = vmatprep.subr.bf16.mxu0 %v628
        %752 = vmatpush1.bf16.msra.mxu0 %v625
        %753 = vmatprep.subr.bf16.mxu0 0
        %754 = vmatpush1.bf16.msra.mxu0 0
        %755 = vmatprep.subr.bf16.mxu0 0
        %756 = vmatpush1.bf16.msra.mxu0 0
        %757 = vmatprep.subr.bf16.mxu0 0
        %758 = vmatpush1.bf16.msra.mxu0 0
        %759 = vmatprep.subr.bf16.mxu0 0
        %760 = vmatpush1.bf16.msra.mxu0 0
        %761 = vmatprep.subr.bf16.mxu0 0
        %762 = vmatpush1.bf16.msra.mxu0 0
        %763 = vmatprep.subr.bf16.mxu0 0
        %764 = vmatpush1.bf16.msra.mxu0 0
        %765 = vmatprep.subr.bf16.mxu0 0
        %766 = vmatpush1.bf16.msra.mxu0 0
        %767 = vmatprep.subr.bf16.mxu0 0
        %768 = vmatpush1.bf16.msra.mxu0 0
        %769 = vmatprep.subr.bf16.mxu0 0
        %770 = vmatpush1.bf16.msra.mxu0 0
        %771 = vmatprep.subr.bf16.mxu0 0
        %772 = vmatpush1.bf16.msra.mxu0 0
        %773 = vmatprep.subr.bf16.mxu0 0
        %774 = vmatpush1.bf16.msra.mxu0 0
        %775 = vmatprep.mubr.bf16.mxu0 0
        %776 = vmatmul.mubr.bf16.gmra.mrb[0].mxu0 %v594
        %v777 = vpop.f32.mrb[0].mxu0
        %v778 = vadd.f32 %v475, %v777
        %v779 = vpop.f32.mrb[0].mxu0
        %v780 = vadd.f32 %v475, %v779
        %v781 = vpop.f32.mrb[0].mxu0
        %v782 = vadd.f32 %v480, %v781
        %v783 = vpop.f32.mrb[0].mxu0
        %v784 = vadd.f32 %v480, %v783
        %785 = vmatprep.mubr.bf16.mxu0 0
        %786 = vmatmul.mubr.bf16.gmra.mrb[0].mxu0 %v597
        %v787 = vpop.f32.mrb[0].mxu0
        %v788 = vadd.f32 %v485, %v787
        %v789 = vpop.f32.mrb[0].mxu0
        %v790 = vadd.f32 %v485, %v789
        %v791 = vpop.f32.mrb[0].mxu0
        %v792 = vadd.f32 %v490, %v791
        %v793 = vpop.f32.mrb[0].mxu0
        %v794 = vadd.f32 %v490, %v793
        %795 = vmatprep.mubr.bf16.mxu0 0
        %796 = vmatmul.mubr.bf16.gmra.mrb[0].mxu0 %v600
        %v797 = vpop.f32.mrb[0].mxu0
        %v798 = vadd.f32 %v495, %v797
        %v799 = vpop.f32.mrb[0].mxu0
        %v800 = vadd.f32 %v495, %v799
        %v801 = vpop.f32.mrb[0].mxu0
        %v802 = vadd.f32 %v500, %v801
        %v803 = vpop.f32.mrb[0].mxu0
        %v804 = vadd.f32 %v500, %v803
        %805 = vmatprep.mubr.bf16.mxu0 0
        %806 = vmatmul.mubr.bf16.gmra.mrb[0].mxu0 %v603
        %v807 = vpop.f32.mrb[0].mxu0
        %v808 = vadd.f32 %v505, %v807
        %v809 = vpop.f32.mrb[0].mxu0
        %v810 = vadd.f32 %v505, %v809
        %v811 = vpop.f32.mrb[0].mxu0
        %v812 = vadd.f32 %v510, %v811
        %v813 = vpop.f32.mrb[0].mxu0
        %v814 = vadd.f32 %v510, %v813
        %815 = vmatprep.mubr.bf16.mxu0 0
        %816 = vmatmul.mubr.bf16.gmra.mrb[0].mxu0 %v606
        %v817 = vpop.f32.mrb[0].mxu0
        %v818 = vadd.f32 %v515, %v817
        %v819 = vpop.f32.mrb[0].mxu0
        %v820 = vadd.f32 %v515, %v819
        %v821 = vpop.f32.mrb[0].mxu0
        %v822 = vadd.f32 %v520, %v821
        %v823 = vpop.f32.mrb[0].mxu0
        %v824 = vadd.f32 %v520, %v823
        %825 = vmatprep.mubr.bf16.mxu0 0
        %826 = vmatmul.mubr.bf16.gmra.mrb[0].mxu0 %v609
        %v827 = vpop.f32.mrb[0].mxu0
        %v828 = vadd.f32 %v525, %v827
        %v829 = vpop.f32.mrb[0].mxu0
        %v830 = vadd.f32 %v525, %v829
        %v831 = vpop.f32.mrb[0].mxu0
        %v832 = vadd.f32 %v530, %v831
        %v833 = vpop.f32.mrb[0].mxu0
        %v834 = vadd.f32 %v530, %v833
        %835 = vmatprep.mubr.bf16.mxu0 0
        %836 = vmatmul.mubr.bf16.gmra.mrb[0].mxu0 %v612
        %v837 = vpop.f32.mrb[0].mxu0
        %v838 = vadd.f32 %v535, %v837
        %v839 = vpop.f32.mrb[0].mxu0
        %v840 = vadd.f32 %v535, %v839
        %v841 = vpop.f32.mrb[0].mxu0
        %v842 = vadd.f32 %v540, %v841
        %v843 = vpop.f32.mrb[0].mxu0
        %v844 = vadd.f32 %v540, %v843
        %845 = vmatprep.mubr.bf16.mxu0 0
        %846 = vmatmul.mubr.bf16.gmra.mrb[0].mxu0 %v615
        %v847 = vpop.f32.mrb[0].mxu0
        %v848 = vadd.f32 %v545, %v847
        %v849 = vpop.f32.mrb[0].mxu0
        %v850 = vadd.f32 %v545, %v849
        %v851 = vpop.f32.mrb[0].mxu0
        %v852 = vadd.f32 %v550, %v851
        %v853 = vpop.f32.mrb[0].mxu0
        %v854 = vadd.f32 %v550, %v853
        %855 = vdwg.mxu0
        %v856 = vmax.f32 %v665, 0.0
        %v857 = vmax.f32 %v667, 0.0
        %v858 = vmax.f32 %v778, 0.0
        %v859 = vmax.f32 %v780, 0.0
        %v860 = vmax.f32 %v669, 0.0
        %v861 = vmax.f32 %v671, 0.0
        %v862 = vmax.f32 %v782, 0.0
        %v863 = vmax.f32 %v784, 0.0
        %v864 = vmax.f32 %v675, 0.0
        %v865 = vmax.f32 %v677, 0.0
        %v866 = vmax.f32 %v788, 0.0
        %v867 = vmax.f32 %v790, 0.0
        %v868 = vmax.f32 %v679, 0.0
        %v869 = vmax.f32 %v681, 0.0
        %v870 = vmax.f32 %v792, 0.0
        %v871 = vmax.f32 %v794, 0.0
        %v872 = vmax.f32 %v685, 0.0
        %v873 = vmax.f32 %v687, 0.0
        %v874 = vmax.f32 %v798, 0.0
        %v875 = vmax.f32 %v800, 0.0
        %v876 = vmax.f32 %v689, 0.0
        %v877 = vmax.f32 %v691, 0.0
        %v878 = vmax.f32 %v802, 0.0
        %v879 = vmax.f32 %v804, 0.0
        %v880 = vmax.f32 %v695, 0.0
        %v881 = vmax.f32 %v697, 0.0
        %v882 = vmax.f32 %v808, 0.0
        %v883 = vmax.f32 %v810, 0.0
        %v884 = vmax.f32 %v699, 0.0
        %v885 = vmax.f32 %v701, 0.0
        %v886 = vmax.f32 %v812, 0.0
        %v887 = vmax.f32 %v814, 0.0
        %v888 = vmax.f32 %v705, 0.0
        %v889 = vmax.f32 %v707, 0.0
        %v890 = vmax.f32 %v818, 0.0
        %v891 = vmax.f32 %v820, 0.0
        %v892 = vmax.f32 %v709, 0.0
        %v893 = vmax.f32 %v711, 0.0
        %v894 = vmax.f32 %v822, 0.0
        %v895 = vmax.f32 %v824, 0.0
        %v896 = vmax.f32 %v715, 0.0
        %v897 = vmax.f32 %v717, 0.0
        %v898 = vmax.f32 %v828, 0.0
        %v899 = vmax.f32 %v830, 0.0
        %v900 = vmax.f32 %v719, 0.0
        %v901 = vmax.f32 %v721, 0.0
        %v902 = vmax.f32 %v832, 0.0
        %v903 = vmax.f32 %v834, 0.0
        %v904 = vmax.f32 %v725, 0.0
        %v905 = vmax.f32 %v727, 0.0
        %v906 = vmax.f32 %v838, 0.0
        %v907 = vmax.f32 %v840, 0.0
        %v908 = vmax.f32 %v729, 0.0
        %v909 = vmax.f32 %v731, 0.0
        %v910 = vmax.f32 %v842, 0.0
        %v911 = vmax.f32 %v844, 0.0
        %v912 = vmax.f32 %v735, 0.0
        %v913 = vmax.f32 %v737, 0.0
        %v914 = vmax.f32 %v848, 0.0
        %v915 = vmax.f32 %v850, 0.0
        %v916 = vmax.f32 %v739, 0.0
        %v917 = vmax.f32 %v741, 0.0
        %v918 = vmax.f32 %v852, 0.0
        %v919 = vmax.f32 %v854, 0.0
        %920 = vst [vmem:[%s166] sm:$0xff] %v856
        %921 = vst [vmem:[%s166 + $0x8] sm:$0xff] %v857
        %922 = vst [vmem:[%s166 + $0x10] sm:$0xff] %v860
        %923 = vst [vmem:[%s166 + $0x18] sm:$0xff] %v861
        %924 = vst [vmem:[%s166 + $0x20] sm:$0xff] %v864
        %925 = vst [vmem:[%s166 + $0x28] sm:$0xff] %v865
        %926 = vst [vmem:[%s166 + $0x30] sm:$0xff] %v868
        %927 = vst [vmem:[%s166 + $0x38] sm:$0xff] %v869
        %928 = vst [vmem:[%s166 + $0x40] sm:$0xff] %v872
        %929 = vst [vmem:[%s166 + $0x48] sm:$0xff] %v873
        %930 = vst [vmem:[%s166 + $0x50] sm:$0xff] %v876
        %931 = vst [vmem:[%s166 + $0x58] sm:$0xff] %v877
        %932 = vst [vmem:[%s166 + $0x60] sm:$0xff] %v880
        %933 = vst [vmem:[%s166 + $0x68] sm:$0xff] %v881
        %934 = vst [vmem:[%s166 + $0x70] sm:$0xff] %v884
        %935 = vst [vmem:[%s166 + $0x78] sm:$0xff] %v885
        %936 = vst [vmem:[%s166 + $0x80] sm:$0xff] %v888
        %937 = vst [vmem:[%s166 + $0x88] sm:$0xff] %v889
        %938 = vst [vmem:[%s166 + $0x90] sm:$0xff] %v892
        %939 = vst [vmem:[%s166 + $0x98] sm:$0xff] %v893
        %940 = vst [vmem:[%s166 + $0xa0] sm:$0xff] %v896
        %941 = vst [vmem:[%s166 + $0xa8] sm:$0xff] %v897
        %942 = vst [vmem:[%s166 + $0xb0] sm:$0xff] %v900
        %943 = vst [vmem:[%s166 + $0xb8] sm:$0xff] %v901
        %944 = vst [vmem:[%s166 + $0xc0] sm:$0xff] %v904
        %945 = vst [vmem:[%s166 + $0xc8] sm:$0xff] %v905
        %946 = vst [vmem:[%s166 + $0xd0] sm:$0xff] %v908
        %947 = vst [vmem:[%s166 + $0xd8] sm:$0xff] %v909
        %948 = vst [vmem:[%s166 + $0xe0] sm:$0xff] %v912
        %949 = vst [vmem:[%s166 + $0xe8] sm:$0xff] %v913
        %950 = vst [vmem:[%s166 + $0xf0] sm:$0xff] %v916
        %951 = vst [vmem:[%s166 + $0xf8] sm:$0xff] %v917
        %s952 = scalar_lea.vmem %s166, 256 [#allocation2]
        %953 = vst [vmem:[%s952] sm:$0xff] %v858
        %954 = vst [vmem:[%s952 + $0x8] sm:$0xff] %v859
        %955 = vst [vmem:[%s952 + $0x10] sm:$0xff] %v862
        %956 = vst [vmem:[%s952 + $0x18] sm:$0xff] %v863
        %957 = vst [vmem:[%s952 + $0x20] sm:$0xff] %v866
        %958 = vst [vmem:[%s952 + $0x28] sm:$0xff] %v867
        %959 = vst [vmem:[%s952 + $0x30] sm:$0xff] %v870
        %960 = vst [vmem:[%s952 + $0x38] sm:$0xff] %v871
        %961 = vst [vmem:[%s952 + $0x40] sm:$0xff] %v874
        %962 = vst [vmem:[%s952 + $0x48] sm:$0xff] %v875
        %963 = vst [vmem:[%s952 + $0x50] sm:$0xff] %v878
        %964 = vst [vmem:[%s952 + $0x58] sm:$0xff] %v879
        %965 = vst [vmem:[%s952 + $0x60] sm:$0xff] %v882
        %966 = vst [vmem:[%s952 + $0x68] sm:$0xff] %v883
        %967 = vst [vmem:[%s952 + $0x70] sm:$0xff] %v886
        %968 = vst [vmem:[%s952 + $0x78] sm:$0xff] %v887
        %969 = vst [vmem:[%s952 + $0x80] sm:$0xff] %v890
        %970 = vst [vmem:[%s952 + $0x88] sm:$0xff] %v891
        %971 = vst [vmem:[%s952 + $0x90] sm:$0xff] %v894
        %972 = vst [vmem:[%s952 + $0x98] sm:$0xff] %v895
        %973 = vst [vmem:[%s952 + $0xa0] sm:$0xff] %v898
        %974 = vst [vmem:[%s952 + $0xa8] sm:$0xff] %v899
        %975 = vst [vmem:[%s952 + $0xb0] sm:$0xff] %v902
        %976 = vst [vmem:[%s952 + $0xb8] sm:$0xff] %v903
        %977 = vst [vmem:[%s952 + $0xc0] sm:$0xff] %v906
        %978 = vst [vmem:[%s952 + $0xc8] sm:$0xff] %v907
        %979 = vst [vmem:[%s952 + $0xd0] sm:$0xff] %v910
        %980 = vst [vmem:[%s952 + $0xd8] sm:$0xff] %v911
        %981 = vst [vmem:[%s952 + $0xe0] sm:$0xff] %v914
        %982 = vst [vmem:[%s952 + $0xe8] sm:$0xff] %v915
        %983 = vst [vmem:[%s952 + $0xf0] sm:$0xff] %v918
        %984 = vst [vmem:[%s952 + $0xf8] sm:$0xff] %v919
        %s985 = sand.u32 %s93, 1
        %s986 = scalar_lea.sflag [#allocation3], %s985
        %s987 = sand.u32 %s93, 1
        %s988 = smul.addr %s987, 512
        %s989 = scalar_lea.vmem [#allocation2], %s988
        // Predicated region
        $region33: #{tpu_custom_call.1} parent=31 // pred_check
          %p990 = pneg %p103
        $region34: #{tpu_custom_call.1} parent=31 // pred_check_branch
          %992 = sbr.rel (%p990) target = $region36
        $region35: #{tpu_custom_call.1} parent=31 // pred_region
          %s993 = smul.u32 2, %s17
          %s995 = ssub.s32 8192, 8192
          %996 = vsyncadd %s986, %s995
          %s997 = smul.addr %s993, 32
          %s998 = smul.addr %s997, 128
          %s999 = scalar_lea.hbm %s3, %s998
          %s1000 = sshll.u32 %s989, 4
          %s1001 = int_to_ptr.vmem [resolvable:$true] %s1000
          %1006 = dma.vmem_to_hbm [thread:$0]  %s1001, 8192, %s999, %s986, 256, 256, 16
        $region36: #{tpu_custom_call.1} parent=31 // pred_fallthru
          _
      $region32: #{tpu_custom_call.1} parent=5 // pred_fallthru
        _
      %p1007 = scmp.le.s32.totalorder 2, %s12
      // Predicated region
      $region37: #{tpu_custom_call.1} parent=5 // pred_check
        %p1008 = pneg %p1007
      $region38: #{tpu_custom_call.1} parent=5 // pred_check_branch
        %1010 = sbr.rel (%p1008) target = $region40
      $region39: #{tpu_custom_call.1} parent=5 // pred_region
        %s1011 = ssub.s32 %s12, 2
        // Predicated region
        $region41: #{tpu_custom_call.1} parent=39 // pred_check
          %p1012 = pneg %p109
        $region42: #{tpu_custom_call.1} parent=39 // pred_check_branch
          %1014 = sbr.rel (%p1012) target = $region44
        $region43: #{tpu_custom_call.1} parent=39 // pred_region
          %s1015 = sand.u32 %s94, 1
          %s1016 = scalar_lea.sflag [#allocation3], %s1015
          %s1017 = sand.u32 %s94, 1
          %s1018 = smul.addr %s1017, 512
          %s1019 = scalar_lea.vmem [#allocation2], %s1018
          %1020 = dma.done %s1016, 8192
        $region44: #{tpu_custom_call.1} parent=39 // pred_fallthru
          _
      $region40: #{tpu_custom_call.1} parent=5 // pred_fallthru
        _
    $region6: #{tpu_custom_call.1} parent=1 // loop_footer
      %s16 = sadd.s32 1, %s12
    $region7: #{tpu_custom_call.1} parent=1 // loop_footer_branch
      %11 = sbr.rel target = $region3
    $region8: #{tpu_custom_call.1} parent=1 // loop_exit
      _
    %1021 = vsyncpa [#allocation3], 1
    %s1022 = scalar_lea.sflag [#allocation3], 1
    %1023 = vsyncpa %s1022, 1

</llo_original>
